<compile_context>
chip_gen: v7x
topology: tpu7x:2x2x1
jax: 0.10.0
libtpu: 0.0.40
codegen_flags: <defaults>
</compile_context>

<pallas_src>
import math
from functools import partial

import jax
import jax.numpy as jnp
import numpy as np
from jax import lax
from jax.experimental import pallas as pl
from jax.experimental.pallas import tpu as pltpu


def _dwpw_bn_hswish_kernel(x_ref, w_ref, shift_ref, mask_ref, o_ref, lhs_ref,
                           *, W, k, pad, Cin, K, K_pad):
    # x_ref:     (1, Cin, HW)      one image, flattened NCHW (lane axis = H*W)
    # w_ref:     (Cout, K_pad)     bf16 combined dw*pw weight, BN scale folded,
    #                              zero-padded along K
    # shift_ref: (Cout, 1)         folded BN shift (beta - mean*scale)
    # mask_ref:  (k*k, HW) f32     precomputed 0/1 border mask per tap
    # o_ref:     (1, Cout, HW)     output in flattened NCHW layout
    # lhs_ref:   (K_pad, HW) bf16  VMEM scratch holding the transposed im2col
    HW = x_ref.shape[2]
    x = x_ref[0]                                   # (Cin, HW) f32

    # Build lhs_ref[(dy*k+dx)*Cin + ci, p] = x_pad[ci, row(p)+dy-pad, col(p)+dx-pad]
    # Each tap is a lane rotation of the whole flattened image (XLU, not a
    # vld/vst relayout); the wrapped lanes are exactly the positions zeroed by
    # the precomputed border mask, which implements the conv zero padding.
    t = 0
    for dy in range(k):
        for dx in range(k):
            oy, ox = dy - pad, dx - pad
            off = oy * W + ox
            if oy == 0 and ox == 0:
                piece = x                           # center tap: no shift, all valid
            else:
                shifted = pltpu.roll(x, shift=(-off) % HW, axis=1)
                piece = shifted * mask_ref[t:t + 1, :]
            lhs_ref[t * Cin:(t + 1) * Cin, :] = piece.astype(lhs_ref.dtype)
            t += 1

    # Zero the contraction pad rows every step: the matching weight columns are
    # zero, but uninitialized scratch could hold NaN patterns (0 * NaN = NaN).
    # Unconditional so it also holds when the batch axis runs on another core.
    if K_pad > K:
        lhs_ref[K:K_pad, :] = jnp.zeros((K_pad - K, HW), lhs_ref.dtype)

    # Single MXU pass: (Cout, K_pad) @ (K_pad, HW), bf16 operands / f32 acc.
    y = jnp.dot(w_ref[...], lhs_ref[...], preferred_element_type=jnp.float32)

    # BN scale already folded into w; only the per-channel shift remains.
    y = y + shift_ref[...]
    # Hardswish.
    y = y * jnp.clip(y + 3.0, 0.0, 6.0) * (1.0 / 6.0)

    o_ref[0] = y.astype(o_ref.dtype)                # lane-dense (HW) store


def dwconv2d_bn_m(x_nchw, w_dw, w_pw, bn_scale, bn_shift, d, *, kernel_size):
    """x_nchw: (N, Cin, H, W).  Returns (N, Cout, H, W)."""
    k = kernel_size
    pad = (k - 1) // 2
    N, Cin, H, W = x_nchw.shape
    Cout = w_pw.shape[1]
    HW = H * W
    K = k * k * Cin
    K_pad = ((K + 127) // 128) * 128                 # aligned contraction extent

    # Combined depthwise*pointwise weight (exact: both convs are linear).
    # w_comb[(dy*k+dx)*Cin + ci, co] = w_dw[dy,dx,ci] * w_pw[ci,co]
    # Built in f32, BN scale folded in f32, cast to bf16 only at the end.
    w_comb = (w_dw.reshape(k * k, Cin, 1) * w_pw.reshape(1, Cin, Cout))
    w_t = jnp.transpose(w_comb.reshape(K, Cout))                     # (Cout, K)
    scale_d = bn_scale[d].reshape(Cout, 1)
    shift_d = bn_shift[d].reshape(Cout, 1)
    w_t = w_t * scale_d                                              # fold BN scale
    w_t = jnp.pad(w_t, ((0, 0), (0, K_pad - K)))                     # zero-pad K
    w_t = w_t.astype(jnp.bfloat16)

    # Precomputed per-tap border masks (k*k, HW); identical for every image and
    # grid step, so they live once in VMEM instead of being recomputed on the VALU.
    p = np.arange(HW)
    rows, cols = p // W, p % W
    masks = []
    for dy in range(k):
        for dx in range(k):
            oy, ox = dy - pad, dx - pad
            masks.append((rows >= -oy) & (rows < H - oy) &
                         (cols >= -ox) & (cols < W - ox))
    masks = jnp.asarray(np.stack(masks).astype(np.float32))          # (k*k, HW)

    x_flat = x_nchw.reshape(N, Cin, HW)                              # free NCHW view

    kernel = partial(_dwpw_bn_hswish_kernel, W=W, k=k, pad=pad,
                     Cin=Cin, K=K, K_pad=K_pad)
    out_flat = pl.pallas_call(
        kernel,
        out_shape=jax.ShapeDtypeStruct((N, Cout, HW), x_nchw.dtype),
        grid=(N,),
        in_specs=[
            pl.BlockSpec((1, Cin, HW), lambda n: (n, 0, 0)),
            pl.BlockSpec((Cout, K_pad), lambda n: (0, 0)),
            pl.BlockSpec((Cout, 1), lambda n: (0, 0)),
            pl.BlockSpec((k * k, HW), lambda n: (0, 0)),
        ],
        out_specs=pl.BlockSpec((1, Cout, HW), lambda n: (n, 0, 0)),
        scratch_shapes=[pltpu.VMEM((K_pad, HW), jnp.bfloat16)],
        compiler_params=pltpu.CompilerParams(
            dimension_semantics=("parallel",),
            vmem_limit_bytes=32 * 1024 * 1024,
        ),
    )(x_flat, w_t, shift_d, masks)

    return out_flat.reshape(N, Cout, H, W)                           # free view back to NCHW


def _reference_nchw(x, wdw_oihw, wpw_oihw, scale, shift, d, k):
    """Pure-JAX reference mirroring the PyTorch forward (NCHW, OIHW, f32)."""
    pad = (k - 1) // 2
    Cin = x.shape[1]
    y = lax.conv_general_dilated(
        x, wdw_oihw, window_strides=(1, 1), padding=((pad, pad), (pad, pad)),
        dimension_numbers=("NCHW", "OIHW", "NCHW"), feature_group_count=Cin)
    y = lax.conv_general_dilated(
        y, wpw_oihw, window_strides=(1, 1), padding="VALID",
        dimension_numbers=("NCHW", "OIHW", "NCHW"))
    y = y * scale[d][None, :, None, None] + shift[d][None, :, None, None]
    return y * jnp.clip(y + 3.0, 0.0, 6.0) / 6.0


if __name__ == "__main__":
    # Small shapes consistent with the module.
    N, Cin, H, W = 2, 8, 16, 16
    Cout = 16
    kernel_size = 3
    num_domains = 2
    domain = 1
    eps = 1e-5
    bn_weight_init = 1.0

    key = jax.random.PRNGKey(0)
    k_dw, k_pw, k_x = jax.random.split(key, 3)

    # PyTorch init: Conv2d weight ~ N(0, sqrt(2 / (kH*kW*out_channels))).
    std_dw = math.sqrt(2.0 / (kernel_size * kernel_size * Cin))
    w_dw_oihw = std_dw * jax.random.normal(k_dw, (Cin, 1, kernel_size, kernel_size),
                                           dtype=jnp.float32)
    std_pw = math.sqrt(2.0 / (1 * 1 * Cout))
    w_pw_oihw = std_pw * jax.random.normal(k_pw, (Cout, Cin, 1, 1), dtype=jnp.float32)

    # BatchNorm2d params (per domain): weight=bn_weight_init, bias=0,
    # running_mean=0, running_var=1  ->  folded scale / shift.
    gamma = jnp.full((num_domains, Cout), bn_weight_init, jnp.float32)
    beta = jnp.zeros((num_domains, Cout), jnp.float32)
    run_mean = jnp.zeros((num_domains, Cout), jnp.float32)
    run_var = jnp.ones((num_domains, Cout), jnp.float32)
    bn_scale = gamma / jnp.sqrt(run_var + eps)
    bn_shift = beta - run_mean * bn_scale

    # Kernel-layout weights: dw (k, k, Cin), pw (Cin, Cout).
    w_dw = jnp.transpose(w_dw_oihw[:, 0, :, :], (1, 2, 0))      # (k, k, Cin)
    w_pw = jnp.transpose(w_pw_oihw[:, :, 0, 0], (1, 0))         # (Cin, Cout)

    x = jax.random.normal(k_x, (N, Cin, H, W), dtype=jnp.float32)

    out = dwconv2d_bn_m(x, w_dw, w_pw, bn_scale, bn_shift, domain,
                        kernel_size=kernel_size)
    out = jax.block_until_ready(out)

    ref = _reference_nchw(x, w_dw_oihw, w_pw_oihw, bn_scale, bn_shift,
                          domain, kernel_size)
    # bf16 MXU operands (f32 accumulation) vs the f32 reference.
    np.testing.assert_allclose(np.asarray(out), np.asarray(ref),
                               rtol=3e-2, atol=3e-2)

    print("KERNEL_OK")
</pallas_src>

<mosaic_0001>
module attributes {stable_mosaic.version = 11 : i64} {
  func.func @_dwpw_bn_hswish_kernel(%arg0: i32, %arg1: memref<1x8x256xf32, #tpu.memory_space<vmem>>, %arg2: memref<16x128xbf16, #tpu.memory_space<vmem>>, %arg3: memref<16x1xf32, #tpu.memory_space<vmem>>, %arg4: memref<9x256xf32, #tpu.memory_space<vmem>>, %arg5: memref<1x16x256xf32, #tpu.memory_space<vmem>>, %arg6: memref<128x256xbf16, #tpu.memory_space<vmem>>) attributes {dimension_semantics = [#tpu.dimension_semantics<parallel>], iteration_bounds = array<i64: 2>, scalar_prefetch = 0 : i64, scratch_operands = 1 : i64, tpu.core_type = #tpu.core_type<tc>, window_params = [{transform_indices = @transform_0, window_bounds = array<i64: 1, 8, 256>}, {pipeline_mode = #tpu.pipeline_mode<synchronous>, transform_indices = @transform_1, window_bounds = array<i64: 16, 128>}, {pipeline_mode = #tpu.pipeline_mode<synchronous>, transform_indices = @transform_2, window_bounds = array<i64: 16, 1>}, {pipeline_mode = #tpu.pipeline_mode<synchronous>, transform_indices = @transform_3, window_bounds = array<i64: 9, 256>}, {transform_indices = @transform_4, window_bounds = array<i64: 1, 16, 256>}]} {
    %c0 = arith.constant 0 : index
    %c0_0 = arith.constant 0 : index
    %c0_1 = arith.constant 0 : index
    %0 = vector.load %arg1[%c0, %c0_0, %c0_1] : memref<1x8x256xf32, #tpu.memory_space<vmem>>, vector<1x8x256xf32>
    %1 = vector.shape_cast %0 : vector<1x8x256xf32> to vector<8x256xf32>
    %c17_i32 = arith.constant 17 : i32
    %2 = tpu.dynamic_rotate %1 by %c17_i32 dim 1 : vector<8x256xf32>, i32 -> vector<8x256xf32>
    %c0_2 = arith.constant 0 : index
    %c0_3 = arith.constant 0 : index
    %3 = vector.load %arg4[%c0_2, %c0_3] : memref<9x256xf32, #tpu.memory_space<vmem>>, vector<1x256xf32>
    %4 = vector.broadcast %3 : vector<1x256xf32> to vector<8x256xf32>
    %5 = arith.mulf %2, %4 : vector<8x256xf32>
    %6 = arith.truncf %5 : vector<8x256xf32> to vector<8x256xbf16>
    %c0_4 = arith.constant 0 : index
    %c0_5 = arith.constant 0 : index
    %7 = vector.load %arg6[%c0_4, %c0_5] : memref<128x256xbf16, #tpu.memory_space<vmem>>, vector<8x256xbf16>
    tpu.vector_store %arg6[%c0_4, %c0_5], %6 {strides = array<i32>} : memref<128x256xbf16, #tpu.memory_space<vmem>>, vector<8x256xbf16>,
    %c16_i32 = arith.constant 16 : i32
    %8 = tpu.dynamic_rotate %1 by %c16_i32 dim 1 : vector<8x256xf32>, i32 -> vector<8x256xf32>
    %c1 = arith.constant 1 : index
    %c0_6 = arith.constant 0 : index
    %9 = vector.load %arg4[%c1, %c0_6] : memref<9x256xf32, #tpu.memory_space<vmem>>, vector<1x256xf32>
    %10 = vector.broadcast %9 : vector<1x256xf32> to vector<8x256xf32>
    %11 = arith.mulf %8, %10 : vector<8x256xf32>
    %12 = arith.truncf %11 : vector<8x256xf32> to vector<8x256xbf16>
    %c8 = arith.constant 8 : index
    %c0_7 = arith.constant 0 : index
    %13 = vector.load %arg6[%c8, %c0_7] : memref<128x256xbf16, #tpu.memory_space<vmem>>, vector<8x256xbf16>
    tpu.vector_store %arg6[%c8, %c0_7], %12 {strides = array<i32>} : memref<128x256xbf16, #tpu.memory_space<vmem>>, vector<8x256xbf16>,
    %c15_i32 = arith.constant 15 : i32
    %14 = tpu.dynamic_rotate %1 by %c15_i32 dim 1 : vector<8x256xf32>, i32 -> vector<8x256xf32>
    %c2 = arith.constant 2 : index
    %c0_8 = arith.constant 0 : index
    %15 = vector.load %arg4[%c2, %c0_8] : memref<9x256xf32, #tpu.memory_space<vmem>>, vector<1x256xf32>
    %16 = vector.broadcast %15 : vector<1x256xf32> to vector<8x256xf32>
    %17 = arith.mulf %14, %16 : vector<8x256xf32>
    %18 = arith.truncf %17 : vector<8x256xf32> to vector<8x256xbf16>
    %c16 = arith.constant 16 : index
    %c0_9 = arith.constant 0 : index
    %19 = vector.load %arg6[%c16, %c0_9] : memref<128x256xbf16, #tpu.memory_space<vmem>>, vector<8x256xbf16>
    tpu.vector_store %arg6[%c16, %c0_9], %18 {strides = array<i32>} : memref<128x256xbf16, #tpu.memory_space<vmem>>, vector<8x256xbf16>,
    %c1_i32 = arith.constant 1 : i32
    %20 = tpu.dynamic_rotate %1 by %c1_i32 dim 1 : vector<8x256xf32>, i32 -> vector<8x256xf32>
    %c3 = arith.constant 3 : index
    %c0_10 = arith.constant 0 : index
    %21 = vector.load %arg4[%c3, %c0_10] : memref<9x256xf32, #tpu.memory_space<vmem>>, vector<1x256xf32>
    %22 = vector.broadcast %21 : vector<1x256xf32> to vector<8x256xf32>
    %23 = arith.mulf %20, %22 : vector<8x256xf32>
    %24 = arith.truncf %23 : vector<8x256xf32> to vector<8x256xbf16>
    %c24 = arith.constant 24 : index
    %c0_11 = arith.constant 0 : index
    %25 = vector.load %arg6[%c24, %c0_11] : memref<128x256xbf16, #tpu.memory_space<vmem>>, vector<8x256xbf16>
    tpu.vector_store %arg6[%c24, %c0_11], %24 {strides = array<i32>} : memref<128x256xbf16, #tpu.memory_space<vmem>>, vector<8x256xbf16>,
    %26 = arith.truncf %1 : vector<8x256xf32> to vector<8x256xbf16>
    %c32 = arith.constant 32 : index
    %c0_12 = arith.constant 0 : index
    %27 = vector.load %arg6[%c32, %c0_12] : memref<128x256xbf16, #tpu.memory_space<vmem>>, vector<8x256xbf16>
    tpu.vector_store %arg6[%c32, %c0_12], %26 {strides = array<i32>} : memref<128x256xbf16, #tpu.memory_space<vmem>>, vector<8x256xbf16>,
    %c255_i32 = arith.constant 255 : i32
    %28 = tpu.dynamic_rotate %1 by %c255_i32 dim 1 : vector<8x256xf32>, i32 -> vector<8x256xf32>
    %c5 = arith.constant 5 : index
    %c0_13 = arith.constant 0 : index
    %29 = vector.load %arg4[%c5, %c0_13] : memref<9x256xf32, #tpu.memory_space<vmem>>, vector<1x256xf32>
    %30 = vector.broadcast %29 : vector<1x256xf32> to vector<8x256xf32>
    %31 = arith.mulf %28, %30 : vector<8x256xf32>
    %32 = arith.truncf %31 : vector<8x256xf32> to vector<8x256xbf16>
    %c40 = arith.constant 40 : index
    %c0_14 = arith.constant 0 : index
    %33 = vector.load %arg6[%c40, %c0_14] : memref<128x256xbf16, #tpu.memory_space<vmem>>, vector<8x256xbf16>
    tpu.vector_store %arg6[%c40, %c0_14], %32 {strides = array<i32>} : memref<128x256xbf16, #tpu.memory_space<vmem>>, vector<8x256xbf16>,
    %c241_i32 = arith.constant 241 : i32
    %34 = tpu.dynamic_rotate %1 by %c241_i32 dim 1 : vector<8x256xf32>, i32 -> vector<8x256xf32>
    %c6 = arith.constant 6 : index
    %c0_15 = arith.constant 0 : index
    %35 = vector.load %arg4[%c6, %c0_15] : memref<9x256xf32, #tpu.memory_space<vmem>>, vector<1x256xf32>
    %36 = vector.broadcast %35 : vector<1x256xf32> to vector<8x256xf32>
    %37 = arith.mulf %34, %36 : vector<8x256xf32>
    %38 = arith.truncf %37 : vector<8x256xf32> to vector<8x256xbf16>
    %c48 = arith.constant 48 : index
    %c0_16 = arith.constant 0 : index
    %39 = vector.load %arg6[%c48, %c0_16] : memref<128x256xbf16, #tpu.memory_space<vmem>>, vector<8x256xbf16>
    tpu.vector_store %arg6[%c48, %c0_16], %38 {strides = array<i32>} : memref<128x256xbf16, #tpu.memory_space<vmem>>, vector<8x256xbf16>,
    %c240_i32 = arith.constant 240 : i32
    %40 = tpu.dynamic_rotate %1 by %c240_i32 dim 1 : vector<8x256xf32>, i32 -> vector<8x256xf32>
    %c7 = arith.constant 7 : index
    %c0_17 = arith.constant 0 : index
    %41 = vector.load %arg4[%c7, %c0_17] : memref<9x256xf32, #tpu.memory_space<vmem>>, vector<1x256xf32>
    %42 = vector.broadcast %41 : vector<1x256xf32> to vector<8x256xf32>
    %43 = arith.mulf %40, %42 : vector<8x256xf32>
    %44 = arith.truncf %43 : vector<8x256xf32> to vector<8x256xbf16>
    %c56 = arith.constant 56 : index
    %c0_18 = arith.constant 0 : index
    %45 = vector.load %arg6[%c56, %c0_18] : memref<128x256xbf16, #tpu.memory_space<vmem>>, vector<8x256xbf16>
    tpu.vector_store %arg6[%c56, %c0_18], %44 {strides = array<i32>} : memref<128x256xbf16, #tpu.memory_space<vmem>>, vector<8x256xbf16>,
    %c239_i32 = arith.constant 239 : i32
    %46 = tpu.dynamic_rotate %1 by %c239_i32 dim 1 : vector<8x256xf32>, i32 -> vector<8x256xf32>
    %c8_19 = arith.constant 8 : index
    %c0_20 = arith.constant 0 : index
    %47 = vector.load %arg4[%c8_19, %c0_20] : memref<9x256xf32, #tpu.memory_space<vmem>>, vector<1x256xf32>
    %48 = vector.broadcast %47 : vector<1x256xf32> to vector<8x256xf32>
    %49 = arith.mulf %46, %48 : vector<8x256xf32>
    %50 = arith.truncf %49 : vector<8x256xf32> to vector<8x256xbf16>
    %c64 = arith.constant 64 : index
    %c0_21 = arith.constant 0 : index
    %51 = vector.load %arg6[%c64, %c0_21] : memref<128x256xbf16, #tpu.memory_space<vmem>>, vector<8x256xbf16>
    tpu.vector_store %arg6[%c64, %c0_21], %50 {strides = array<i32>} : memref<128x256xbf16, #tpu.memory_space<vmem>>, vector<8x256xbf16>,
    %cst = arith.constant 0.000000e+00 : bf16
    %52 = vector.broadcast %cst : bf16 to vector<56x256xbf16>
    %c72 = arith.constant 72 : index
    %c0_22 = arith.constant 0 : index
    %53 = vector.load %arg6[%c72, %c0_22] : memref<128x256xbf16, #tpu.memory_space<vmem>>, vector<56x256xbf16>
    tpu.vector_store %arg6[%c72, %c0_22], %52 {strides = array<i32>} : memref<128x256xbf16, #tpu.memory_space<vmem>>, vector<56x256xbf16>,
    %c0_23 = arith.constant 0 : index
    %c0_24 = arith.constant 0 : index
    %54 = vector.load %arg2[%c0_23, %c0_24] : memref<16x128xbf16, #tpu.memory_space<vmem>>, vector<16x128xbf16>
    %c0_25 = arith.constant 0 : index
    %c0_26 = arith.constant 0 : index
    %55 = vector.load %arg6[%c0_25, %c0_26] : memref<128x256xbf16, #tpu.memory_space<vmem>>, vector<128x256xbf16>
    %cst_27 = arith.constant dense<0.000000e+00> : vector<16x256xf32>
    %56 = tpu.matmul %54, %55, %cst_27 {dimension_numbers = #tpu.dot_dimension_numbers<[1], [0], [0], [1], [0, 0, 1, 1], [], []>} : vector<16x128xbf16>, vector<128x256xbf16>, vector<16x256xf32> -> vector<16x256xf32>
    %c0_28 = arith.constant 0 : index
    %c0_29 = arith.constant 0 : index
    %57 = vector.load %arg3[%c0_28, %c0_29] : memref<16x1xf32, #tpu.memory_space<vmem>>, vector<16x1xf32>
    %58 = vector.broadcast %57 : vector<16x1xf32> to vector<16x256xf32>
    %59 = arith.addf %56, %58 : vector<16x256xf32>
    %cst_30 = arith.constant 3.000000e+00 : f32
    %60 = vector.broadcast %cst_30 : f32 to vector<16x256xf32>
    %61 = arith.addf %59, %60 : vector<16x256xf32>
    %cst_31 = arith.constant 0.000000e+00 : f32
    %cst_32 = arith.constant 6.000000e+00 : f32
    %62 = vector.broadcast %cst_31 : f32 to vector<16x256xf32>
    %63 = arith.maximumf %62, %61 : vector<16x256xf32>
    %64 = vector.broadcast %cst_32 : f32 to vector<16x256xf32>
    %65 = arith.minimumf %64, %63 : vector<16x256xf32>
    %66 = arith.mulf %59, %65 : vector<16x256xf32>
    %cst_33 = arith.constant 0.166666672 : f32
    %67 = vector.broadcast %cst_33 : f32 to vector<16x256xf32>
    %68 = arith.mulf %66, %67 : vector<16x256xf32>
    %c0_34 = arith.constant 0 : index
    %c0_35 = arith.constant 0 : index
    %c0_36 = arith.constant 0 : index
    %69 = vector.load %arg5[%c0_34, %c0_35, %c0_36] : memref<1x16x256xf32, #tpu.memory_space<vmem>>, vector<1x16x256xf32>
    %70 = vector.shape_cast %69 : vector<1x16x256xf32> to vector<16x256xf32>
    %71 = vector.shape_cast %68 : vector<16x256xf32> to vector<1x16x256xf32>
    tpu.vector_store %arg5[%c0_34, %c0_35, %c0_36], %71 {strides = array<i32>} : memref<1x16x256xf32, #tpu.memory_space<vmem>>, vector<1x16x256xf32>,
    return
  }
  func.func @transform_0(%arg0: i32) -> (i32, i32, i32) {
    %c0_i32 = arith.constant 0 : i32
    %c0_i32_0 = arith.constant 0 : i32
    %c0_i32_1 = arith.constant 0 : i32
    return %arg0, %c0_i32, %c0_i32_0 : i32, i32, i32
  }
  func.func @transform_1(%arg0: i32) -> (i32, i32) {
    %c0_i32 = arith.constant 0 : i32
    %c0_i32_0 = arith.constant 0 : i32
    %c0_i32_1 = arith.constant 0 : i32
    return %c0_i32, %c0_i32_0 : i32, i32
  }
  func.func @transform_2(%arg0: i32) -> (i32, i32) {
    %c0_i32 = arith.constant 0 : i32
    %c0_i32_0 = arith.constant 0 : i32
    %c0_i32_1 = arith.constant 0 : i32
    return %c0_i32, %c0_i32_0 : i32, i32
  }
  func.func @transform_3(%arg0: i32) -> (i32, i32) {
    %c0_i32 = arith.constant 0 : i32
    %c0_i32_0 = arith.constant 0 : i32
    %c0_i32_1 = arith.constant 0 : i32
    return %c0_i32, %c0_i32_0 : i32, i32
  }
  func.func @transform_4(%arg0: i32) -> (i32, i32, i32) {
    %c0_i32 = arith.constant 0 : i32
    %c0_i32_0 = arith.constant 0 : i32
    %c0_i32_1 = arith.constant 0 : i32
    return %arg0, %c0_i32, %c0_i32_0 : i32, i32, i32
  }
}

</mosaic_0001>

<llo_original>
// kernel: tpu_custom_call.1
$region0: #{tpu_custom_call.1}
  #allocation0 [shape = 'u32[]', space=smem, size = 0x4, offset = 0x4, fixed_abs, tag = 'smem constant byte address 0x4 - core index']
  #allocation1 [shape = 'u32[144,128]{1,0:T(1,128)}', space=vmem, size = 0x12000, scoped, tag = 'internal scratch']
  #allocation2 [shape = 'bf16[128,256]{1,0:T(16,128)(2,1)}', space=vmem, size = 0x10000, scoped, tag = 'scratch operand']
  %s0 = inlined_call_operand.hbm [shape: f32[2,8,256], index: 0, kind: input, shape index: {}]
  %s1 = inlined_call_operand.vmem [shape: bf16[16,128], index: 1, kind: input, shape index: {}]
  %s2 = inlined_call_operand.vmem [shape: f32[16,1], index: 2, kind: input, shape index: {}]
  %s3 = inlined_call_operand.hbm [shape: f32[9,256], index: 3, kind: input, shape index: {}]
  %s4 = inlined_call_operand.hbm [shape: f32[2,16,256], index: 4, kind: output, shape index: {}]
  %s5 = sld [smem:[#allocation0]]
  $region57: #{tpu_custom_call.1} parent=0
    _
  %s7 = ssub.s32 1, %s5
  %s8 = scalar_select 0, %s7, %s5
  $region1: #{tpu_custom_call.1} parent=0
    #allocation3 [shape = 'u8[16384]{0}', space=vmem, size = 0x4000, scoped, tag = 'input window, operand 0']
    #allocation4 [shape = 's32[2]{0}', space=sflag, size = 0x8, scoped, tag = 'scoped memory for tpu_custom_call.1']
    #allocation5 [shape = 's32[2]{0}', space=sflag, size = 0x8, scoped, tag = 'scoped memory for tpu_custom_call.1']
    #allocation6 [shape = 'u8[16384]{0}', space=vmem, size = 0x4000, scoped, tag = 'input window, operand 3, single buffered']
    #allocation7 [shape = 's32[1]{0}', space=sflag, size = 0x4, scoped, tag = 'scoped memory for tpu_custom_call.1']
    #allocation8 [shape = 'u8[32768]{0}', space=vmem, size = 0x8000, scoped, tag = 'output window, operand 0']
    %9 = vsyncpa [#allocation4], 0
    %s10 = scalar_lea.sflag [#allocation4], 1
    %11 = vsyncpa %s10, 0
    %12 = vsyncpa [#allocation7], 0
    %13 = vsyncpa [#allocation5], 0
    %s14 = scalar_lea.sflag [#allocation5], 1
    %15 = vsyncpa %s14, 0
    loop: start=0, step=1, limit=4
    $region2: #{tpu_custom_call.1} parent=1 // loop_pre_header
      _
    $region3: #{tpu_custom_call.1} parent=1 // loop_header
      %s17 = sphi 0, %s21
      %p18 = scmp.ge.s32.totalorder %s17, 4
      %s27 = sphi 0, %s29
      %s30 = sphi 0, %s27
      %s31 = sphi 0, %s30
      %s47 = sphi 0, %s31
      %s51 = sphi 0, %s51
      %s53 = sphi 0, %s51
      %s54 = sphi 0, %s53
      %s68 = sphi 0, %s54
      %s72 = sphi 0, %s72
      %s74 = sphi 0, %s72
      %s75 = sphi 0, %s74
      %s89 = sphi 0, %s75
      %s93 = sphi 0, %s93
      %s95 = sphi 0, %s93
      %s96 = sphi 0, %s95
      %s110 = sphi 0, %s96
      %s116 = sphi 0, %s118
      %s119 = sphi 0, %s116
      %s120 = sphi 0, %s119
      %s136 = sphi 0, %s120
    $region4: #{tpu_custom_call.1} parent=1 // loop_header_branch
      %20 = sbr.rel (%p18) target = $region8
    $region5: #{tpu_custom_call.1} parent=1 // loop_body
      %s22 = ssub.s32 %s17, 1
      %s23 = ssub.s32 %s17, 2
      %s24 = sadd.s32 %s17, 1
      %s25 = ssub.s32 %s17, %s24
      %p26 = scmp.eq.s32.totalorder %s25, 0
      %s28 = sadd.s32 %s27, 1
      %s29 = scalar_select %p26, %s27, %s28
      %p32 = pneg %p26
      %p33 = scmp.eq.s32.totalorder %s17, 1
      %p34 = por %p32, %p33
      %p35 = scmp.ne.s32.totalorder %s27, %s30
      %p36 = scmp.eq.s32.totalorder %s17, 0
      %p37 = por %p35, %p36
      %p38 = scmp.ne.s32.totalorder %s27, %s30
      %p39 = scmp.eq.s32.totalorder %s22, 1
      %p40 = por %p38, %p39
      %p41 = scmp.ne.s32.totalorder %s30, %s31
      %p42 = scmp.eq.s32.totalorder %s22, 0
      %p43 = por %p41, %p42
      %p44 = scmp.ne.s32.totalorder %s30, %s31
      %p45 = scmp.eq.s32.totalorder %s23, 1
      %p46 = por %p44, %p45
      %p48 = scmp.ne.s32.totalorder %s31, %s47
      %p49 = scmp.eq.s32.totalorder %s23, 0
      %p50 = por %p48, %p49
      %s52 = sadd.s32 %s51, 1
      %p55 = scmp.eq.s32.totalorder %s17, 1
      %p56 = scmp.ne.s32.totalorder %s51, %s53
      %p57 = scmp.eq.s32.totalorder %s17, 0
      %p58 = por %p56, %p57
      %p59 = scmp.ne.s32.totalorder %s51, %s53
      %p60 = scmp.eq.s32.totalorder %s22, 1
      %p61 = por %p59, %p60
      %p62 = scmp.ne.s32.totalorder %s53, %s54
      %p63 = scmp.eq.s32.totalorder %s22, 0
      %p64 = por %p62, %p63
      %p65 = scmp.ne.s32.totalorder %s53, %s54
      %p66 = scmp.eq.s32.totalorder %s23, 1
      %p67 = por %p65, %p66
      %p69 = scmp.ne.s32.totalorder %s54, %s68
      %p70 = scmp.eq.s32.totalorder %s23, 0
      %p71 = por %p69, %p70
      %s73 = sadd.s32 %s72, 1
      %p76 = scmp.eq.s32.totalorder %s17, 1
      %p77 = scmp.ne.s32.totalorder %s72, %s74
      %p78 = scmp.eq.s32.totalorder %s17, 0
      %p79 = por %p77, %p78
      %p80 = scmp.ne.s32.totalorder %s72, %s74
      %p81 = scmp.eq.s32.totalorder %s22, 1
      %p82 = por %p80, %p81
      %p83 = scmp.ne.s32.totalorder %s74, %s75
      %p84 = scmp.eq.s32.totalorder %s22, 0
      %p85 = por %p83, %p84
      %p86 = scmp.ne.s32.totalorder %s74, %s75
      %p87 = scmp.eq.s32.totalorder %s23, 1
      %p88 = por %p86, %p87
      %p90 = scmp.ne.s32.totalorder %s75, %s89
      %p91 = scmp.eq.s32.totalorder %s23, 0
      %p92 = por %p90, %p91
      %s94 = sadd.s32 %s93, 1
      %p97 = scmp.eq.s32.totalorder %s17, 1
      %p98 = scmp.ne.s32.totalorder %s93, %s95
      %p99 = scmp.eq.s32.totalorder %s17, 0
      %p100 = por %p98, %p99
      %p101 = scmp.ne.s32.totalorder %s93, %s95
      %p102 = scmp.eq.s32.totalorder %s22, 1
      %p103 = por %p101, %p102
      %p104 = scmp.ne.s32.totalorder %s95, %s96
      %p105 = scmp.eq.s32.totalorder %s22, 0
      %p106 = por %p104, %p105
      %p107 = scmp.ne.s32.totalorder %s95, %s96
      %p108 = scmp.eq.s32.totalorder %s23, 1
      %p109 = por %p107, %p108
      %p111 = scmp.ne.s32.totalorder %s96, %s110
      %p112 = scmp.eq.s32.totalorder %s23, 0
      %p113 = por %p111, %p112
      %s114 = ssub.s32 %s17, %s24
      %p115 = scmp.eq.s32.totalorder %s114, 0
      %s117 = sadd.s32 %s116, 1
      %s118 = scalar_select %p115, %s116, %s117
      %p121 = pneg %p115
      %p122 = scmp.eq.s32.totalorder %s17, 1
      %p123 = por %p121, %p122
      %p124 = scmp.ne.s32.totalorder %s116, %s119
      %p125 = scmp.eq.s32.totalorder %s17, 0
      %p126 = por %p124, %p125
      %p127 = scmp.ne.s32.totalorder %s116, %s119
      %p128 = scmp.eq.s32.totalorder %s22, 1
      %p129 = por %p127, %p128
      %p130 = scmp.ne.s32.totalorder %s119, %s120
      %p131 = scmp.eq.s32.totalorder %s22, 0
      %p132 = por %p130, %p131
      %p133 = scmp.ne.s32.totalorder %s119, %s120
      %p134 = scmp.eq.s32.totalorder %s23, 1
      %p135 = por %p133, %p134
      %p137 = scmp.ne.s32.totalorder %s120, %s136
      %p138 = scmp.eq.s32.totalorder %s23, 0
      %p139 = por %p137, %p138
      %p140 = scmp.le.s32.totalorder 1, %s17
      %p141 = scmp.lt.s32.totalorder %s17, 3
      %p142 = pnand %p140, %p141
      %p143 = pneg %p142
      // Predicated region
      $region9: #{tpu_custom_call.1} parent=5 // pred_check
        _
      $region10: #{tpu_custom_call.1} parent=5 // pred_check_branch
        %145 = sbr.rel (%p142) target = $region12
      $region11: #{tpu_custom_call.1} parent=5 // pred_region
        %s146 = ssub.s32 %s17, 1
        // Predicated region
        $region13: #{tpu_custom_call.1} parent=11 // pred_check
          %p147 = pneg %p64
        $region14: #{tpu_custom_call.1} parent=11 // pred_check_branch
          %149 = sbr.rel (%p147) target = $region16
        $region15: #{tpu_custom_call.1} parent=11 // pred_region
          _
        $region16: #{tpu_custom_call.1} parent=11 // pred_fallthru
          _
        // Predicated region
        $region17: #{tpu_custom_call.1} parent=11 // pred_check
          %p150 = pneg %p85
        $region18: #{tpu_custom_call.1} parent=11 // pred_check_branch
          %152 = sbr.rel (%p150) target = $region20
        $region19: #{tpu_custom_call.1} parent=11 // pred_region
          _
        $region20: #{tpu_custom_call.1} parent=11 // pred_fallthru
          _
        // Predicated region
        $region21: #{tpu_custom_call.1} parent=11 // pred_check
          %p153 = pneg %p106
        $region22: #{tpu_custom_call.1} parent=11 // pred_check_branch
          %155 = sbr.rel (%p153) target = $region24
        $region23: #{tpu_custom_call.1} parent=11 // pred_region
          %s157 = ssub.s32 512, 512
          %158 = vsyncadd [#allocation7], %s157
          %s159 = sshll.u32 [#allocation6], 4
          %s160 = int_to_ptr.vmem [resolvable:$true] %s159
          %165 = dma.hbm_to_vmem [thread:$0]  %s3, 512, %s160, [#allocation7], 256, 256, 16
        $region24: #{tpu_custom_call.1} parent=11 // pred_fallthru
          _
      $region12: #{tpu_custom_call.1} parent=5 // pred_fallthru
        _
      %p166 = scmp.lt.s32.totalorder %s17, 2
      // Predicated region
      $region25: #{tpu_custom_call.1} parent=5 // pred_check
        %p167 = pneg %p166
      $region26: #{tpu_custom_call.1} parent=5 // pred_check_branch
        %169 = sbr.rel (%p167) target = $region28
      $region27: #{tpu_custom_call.1} parent=5 // pred_region
        // Predicated region
        $region29: #{tpu_custom_call.1} parent=27 // pred_check
          %p170 = pneg %p37
        $region30: #{tpu_custom_call.1} parent=27 // pred_check_branch
          %172 = sbr.rel (%p170) target = $region32
        $region31: #{tpu_custom_call.1} parent=27 // pred_region
          %s173 = sand.u32 %s27, 1
          %s174 = scalar_lea.sflag [#allocation4], %s173
          %s175 = sand.u32 %s27, 1
          %s176 = smul.addr %s175, 16
          %s177 = scalar_lea.vmem [#allocation3], %s176
          %s179 = ssub.s32 256, 256
          %180 = vsyncadd %s174, %s179
          %s181 = smul.addr %s17, 2
          %s182 = smul.addr %s181, 128
          %s183 = scalar_lea.hbm %s0, %s182
          %s185 = sshll.u32 %s177, 4
          %s186 = int_to_ptr.vmem [resolvable:$true] %s185
          %188 = dma.hbm_to_vmem [thread:$0]  %s183, 256, %s186, %s174
        $region32: #{tpu_custom_call.1} parent=27 // pred_fallthru
          _
      $region28: #{tpu_custom_call.1} parent=5 // pred_fallthru
        _
      %p189 = scmp.le.s32.totalorder 1, %s17
      %p190 = scmp.lt.s32.totalorder %s17, 3
      %p191 = pnand %p189, %p190
      %p192 = pneg %p191
      // Predicated region
      $region33: #{tpu_custom_call.1} parent=5 // pred_check
        _
      $region34: #{tpu_custom_call.1} parent=5 // pred_check_branch
        %194 = sbr.rel (%p191) target = $region36
      $region35: #{tpu_custom_call.1} parent=5 // pred_region
        %s195 = ssub.s32 %s17, 1
        %s196 = sand.u32 %s30, 1
        %s197 = scalar_lea.sflag [#allocation4], %s196
        %s198 = sand.u32 %s30, 1
        %s199 = smul.addr %s198, 16
        %s200 = scalar_lea.vmem [#allocation3], %s199
        // Predicated region
        $region37: #{tpu_custom_call.1} parent=35 // pred_check
          %p201 = pneg %p43
        $region38: #{tpu_custom_call.1} parent=35 // pred_check_branch
          %203 = sbr.rel (%p201) target = $region40
        $region39: #{tpu_custom_call.1} parent=35 // pred_region
          %204 = dma.done %s197, 256
        $region40: #{tpu_custom_call.1} parent=35 // pred_fallthru
          _
        // Predicated region
        $region41: #{tpu_custom_call.1} parent=35 // pred_check
          %p205 = pneg %p106
        $region42: #{tpu_custom_call.1} parent=35 // pred_check_branch
          %207 = sbr.rel (%p205) target = $region44
        $region43: #{tpu_custom_call.1} parent=35 // pred_region
          %208 = dma.done [#allocation7], 512
        $region44: #{tpu_custom_call.1} parent=35 // pred_fallthru
          _
        %s209 = sand.u32 %s30, 1
        %s210 = scalar_lea.sflag [#allocation4], %s209
        %s211 = sand.u32 %s30, 1
        %s212 = smul.addr %s211, 16
        %s213 = scalar_lea.vmem [#allocation3], %s212
        %p214 = pneg %p43
        %p215 = pneg %p40
        %p216 = pneg %p64
        %p217 = pneg %p61
        %p218 = pneg %p85
        %p219 = pneg %p82
        %p220 = pneg %p106
        %p221 = pneg %p103
        %p222 = pneg %p132
        %p223 = pneg %p129
        %s224 = sand.u32 %s119, 1
        %s225 = scalar_lea.sflag [#allocation5], %s224
        %s226 = sand.u32 %s119, 1
        %s227 = smul.addr %s226, 32
        %s228 = scalar_lea.vmem [#allocation8], %s227
        %v230 = vld [vmem:[%s200] sm:$0xff]
        %v231 = vld [vmem:[%s200 + $0x8] sm:$0xff]
        %232 = vrot.lane.b32.xlu0 %v230, 17
        %v233 = vpop.permute.xlu0 %232
        %234 = vrot.lane.b32.xlu0 %v231, 17
        %v235 = vpop.permute.xlu0 %234
        %v236 = vlaneseq
        %v237 = vand.u32 %v236, 127
        %vm238 = vcmp.lt.s32.totalorder %v237, 17
        %v239 = vsel %vm238, %v233, %v235
        %v240 = vsel %vm238, %v235, %v233
        %v241 = vld [vmem:[#allocation6] ss:$8 sm:$0x3]
        %v243 = vlaneseq
        %v244 = vshrl.u32 %v243, 7
        %v245 = vsub.s32 0, %v244
        %v246 = vrot.slane %v241, %v245
        %v247 = vlaneseq
        %v248 = vshrl.u32 %v247, 7
        %v249 = vsub.s32 1, %v248
        %v250 = vrot.slane %v241, %v249
        %v253 = vmul.f32 %v240, %v246
        %v254 = vmul.f32 %v239, %v250
        %v255 = vpack.c.bf16 %v253, %v253
        %v256 = vpack.c.bf16 %v254, %v254
        %257 = vst [vmem:[#allocation2] sm:$0xf] %v255
        %258 = vst [vmem:[#allocation2 + $0x8] sm:$0xf] %v256
        %259 = vrot.lane.b32.xlu0 %v230, 16
        %v260 = vpop.permute.xlu0 %259
        %261 = vrot.lane.b32.xlu0 %v231, 16
        %v262 = vpop.permute.xlu0 %261
        %vm263 = vcmp.lt.s32.totalorder %v237, 16
        %v264 = vsel %vm263, %v260, %v262
        %v265 = vsel %vm263, %v262, %v260
        %s266 = scalar_lea.vmem [#allocation6], 1
        %v267 = vld [vmem:[%s266] ss:$8 sm:$0x3]
        %v269 = vlaneseq
        %v270 = vshrl.u32 %v269, 7
        %v271 = vsub.s32 0, %v270
        %v272 = vrot.slane %v267, %v271
        %v273 = vlaneseq
        %v274 = vshrl.u32 %v273, 7
        %v275 = vsub.s32 1, %v274
        %v276 = vrot.slane %v267, %v275
        %v279 = vmul.f32 %v265, %v272
        %v280 = vmul.f32 %v264, %v276
        %v281 = vpack.c.bf16 %v279, %v279
        %v282 = vpack.c.bf16 %v280, %v280
        %v285 = vrot.slane %v281, 4
        %v286 = vrot.slane %v282, 4
        %289 = vst [vmem:[#allocation2] sm:$0xf0] %v285
        %290 = vst [vmem:[#allocation2 + $0x8] sm:$0xf0] %v286
        %291 = vrot.lane.b32.xlu0 %v230, 15
        %v292 = vpop.permute.xlu0 %291
        %293 = vrot.lane.b32.xlu0 %v231, 15
        %v294 = vpop.permute.xlu0 %293
        %vm295 = vcmp.lt.s32.totalorder %v237, 15
        %v296 = vsel %vm295, %v292, %v294
        %v297 = vsel %vm295, %v294, %v292
        %s298 = scalar_lea.vmem [#allocation6], 2
        %v299 = vld [vmem:[%s298] ss:$8 sm:$0x3]
        %v301 = vlaneseq
        %v302 = vshrl.u32 %v301, 7
        %v303 = vsub.s32 0, %v302
        %v304 = vrot.slane %v299, %v303
        %v305 = vlaneseq
        %v306 = vshrl.u32 %v305, 7
        %v307 = vsub.s32 1, %v306
        %v308 = vrot.slane %v299, %v307
        %v311 = vmul.f32 %v297, %v304
        %v312 = vmul.f32 %v296, %v308
        %v313 = vpack.c.bf16 %v311, %v311
        %v314 = vpack.c.bf16 %v312, %v312
        %315 = vst [vmem:[#allocation2 + $0x10] sm:$0xf] %v313
        %316 = vst [vmem:[#allocation2 + $0x18] sm:$0xf] %v314
        %317 = vrot.lane.b32.xlu0 %v230, 1
        %v318 = vpop.permute.xlu0 %317
        %319 = vrot.lane.b32.xlu0 %v231, 1
        %v320 = vpop.permute.xlu0 %319
        %vm321 = vcmp.lt.s32.totalorder %v237, 1
        %v322 = vsel %vm321, %v318, %v320
        %v323 = vsel %vm321, %v320, %v318
        %s324 = scalar_lea.vmem [#allocation6], 3
        %v325 = vld [vmem:[%s324] ss:$8 sm:$0x3]
        %v327 = vlaneseq
        %v328 = vshrl.u32 %v327, 7
        %v329 = vsub.s32 0, %v328
        %v330 = vrot.slane %v325, %v329
        %v331 = vlaneseq
        %v332 = vshrl.u32 %v331, 7
        %v333 = vsub.s32 1, %v332
        %v334 = vrot.slane %v325, %v333
        %v337 = vmul.f32 %v323, %v330
        %v338 = vmul.f32 %v322, %v334
        %v339 = vpack.c.bf16 %v337, %v337
        %v340 = vpack.c.bf16 %v338, %v338
        %v343 = vrot.slane %v339, 4
        %v344 = vrot.slane %v340, 4
        %347 = vst [vmem:[#allocation2 + $0x10] sm:$0xf0] %v343
        %348 = vst [vmem:[#allocation2 + $0x18] sm:$0xf0] %v344
        %v349 = vpack.c.bf16 %v230, %v230
        %v350 = vpack.c.bf16 %v231, %v231
        %351 = vst [vmem:[#allocation2 + $0x20] sm:$0xf] %v349
        %352 = vst [vmem:[#allocation2 + $0x28] sm:$0xf] %v350
        %353 = vrot.lane.b32.xlu0 %v230, 127
        %v354 = vpop.permute.xlu0 %353
        %355 = vrot.lane.b32.xlu0 %v231, 127
        %v356 = vpop.permute.xlu0 %355
        %vm357 = vcmp.lt.s32.totalorder %v237, 127
        %v358 = vsel %vm357, %v354, %v356
        %v359 = vsel %vm357, %v356, %v354
        %s360 = scalar_lea.vmem [#allocation6], 5
        %v361 = vld [vmem:[%s360] ss:$8 sm:$0x3]
        %v363 = vlaneseq
        %v364 = vshrl.u32 %v363, 7
        %v365 = vsub.s32 0, %v364
        %v366 = vrot.slane %v361, %v365
        %v367 = vlaneseq
        %v368 = vshrl.u32 %v367, 7
        %v369 = vsub.s32 1, %v368
        %v370 = vrot.slane %v361, %v369
        %v373 = vmul.f32 %v358, %v366
        %v374 = vmul.f32 %v359, %v370
        %v375 = vpack.c.bf16 %v373, %v373
        %v376 = vpack.c.bf16 %v374, %v374
        %v379 = vrot.slane %v375, 4
        %v380 = vrot.slane %v376, 4
        %383 = vst [vmem:[#allocation2 + $0x20] sm:$0xf0] %v379
        %384 = vst [vmem:[#allocation2 + $0x28] sm:$0xf0] %v380
        %385 = vrot.lane.b32.xlu0 %v230, 113
        %v386 = vpop.permute.xlu0 %385
        %387 = vrot.lane.b32.xlu0 %v231, 113
        %v388 = vpop.permute.xlu0 %387
        %vm389 = vcmp.lt.s32.totalorder %v237, 113
        %v390 = vsel %vm389, %v386, %v388
        %v391 = vsel %vm389, %v388, %v386
        %s392 = scalar_lea.vmem [#allocation6], 6
        %v393 = vld [vmem:[%s392] ss:$8 sm:$0x3]
        %v395 = vlaneseq
        %v396 = vshrl.u32 %v395, 7
        %v397 = vsub.s32 0, %v396
        %v398 = vrot.slane %v393, %v397
        %v399 = vlaneseq
        %v400 = vshrl.u32 %v399, 7
        %v401 = vsub.s32 1, %v400
        %v402 = vrot.slane %v393, %v401
        %v405 = vmul.f32 %v390, %v398
        %v406 = vmul.f32 %v391, %v402
        %v407 = vpack.c.bf16 %v405, %v405
        %v408 = vpack.c.bf16 %v406, %v406
        %409 = vst [vmem:[#allocation2 + $0x30] sm:$0xf] %v407
        %410 = vst [vmem:[#allocation2 + $0x38] sm:$0xf] %v408
        %411 = vrot.lane.b32.xlu0 %v230, 112
        %v412 = vpop.permute.xlu0 %411
        %413 = vrot.lane.b32.xlu0 %v231, 112
        %v414 = vpop.permute.xlu0 %413
        %vm415 = vcmp.lt.s32.totalorder %v237, 112
        %v416 = vsel %vm415, %v412, %v414
        %v417 = vsel %vm415, %v414, %v412
        %s418 = scalar_lea.vmem [#allocation6], 7
        %v419 = vld [vmem:[%s418] ss:$8 sm:$0x3]
        %v421 = vlaneseq
        %v422 = vshrl.u32 %v421, 7
        %v423 = vsub.s32 0, %v422
        %v424 = vrot.slane %v419, %v423
        %v425 = vlaneseq
        %v426 = vshrl.u32 %v425, 7
        %v427 = vsub.s32 1, %v426
        %v428 = vrot.slane %v419, %v427
        %v431 = vmul.f32 %v416, %v424
        %v432 = vmul.f32 %v417, %v428
        %v433 = vpack.c.bf16 %v431, %v431
        %v434 = vpack.c.bf16 %v432, %v432
        %v437 = vrot.slane %v433, 4
        %v438 = vrot.slane %v434, 4
        %441 = vst [vmem:[#allocation2 + $0x30] sm:$0xf0] %v437
        %442 = vst [vmem:[#allocation2 + $0x38] sm:$0xf0] %v438
        %443 = vrot.lane.b32.xlu0 %v230, 111
        %v444 = vpop.permute.xlu0 %443
        %445 = vrot.lane.b32.xlu0 %v231, 111
        %v446 = vpop.permute.xlu0 %445
        %vm447 = vcmp.lt.s32.totalorder %v237, 111
        %v448 = vsel %vm447, %v444, %v446
        %v449 = vsel %vm447, %v446, %v444
        %s450 = scalar_lea.vmem [#allocation6], 16
        %v451 = vld [vmem:[%s450] ss:$8 sm:$0x3]
        %v453 = vlaneseq
        %v454 = vshrl.u32 %v453, 7
        %v455 = vsub.s32 0, %v454
        %v456 = vrot.slane %v451, %v455
        %v457 = vlaneseq
        %v458 = vshrl.u32 %v457, 7
        %v459 = vsub.s32 1, %v458
        %v460 = vrot.slane %v451, %v459
        %v463 = vmul.f32 %v448, %v456
        %v464 = vmul.f32 %v449, %v460
        %v465 = vpack.c.bf16 %v463, %v463
        %v466 = vpack.c.bf16 %v464, %v464
        %467 = vst [vmem:[#allocation2 + $0x40] sm:$0xf] %v465
        %468 = vst [vmem:[#allocation2 + $0x48] sm:$0xf] %v466
        %469 = vst [vmem:[#allocation2 + $0x40] sm:$0xf0] 0
        %470 = vst [vmem:[#allocation2 + $0x48] sm:$0xf0] 0
        %471 = vst [vmem:[#allocation2 + $0x50] sm:$0xff] 0
        %472 = vst [vmem:[#allocation2 + $0x58] sm:$0xff] 0
        %473 = vst [vmem:[#allocation2 + $0x60] sm:$0xff] 0
        %474 = vst [vmem:[#allocation2 + $0x68] sm:$0xff] 0
        %475 = vst [vmem:[#allocation2 + $0x70] sm:$0xff] 0
        %476 = vst [vmem:[#allocation2 + $0x78] sm:$0xff] 0
        %v477 = vld [vmem:[%s1] sm:$0xf]
        %v478 = vld [vmem:[%s1 + $0x4] sm:$0xf]
        %v479 = vld [vmem:[#allocation2] sm:$0xff]
        %v480 = vld [vmem:[#allocation2 + $0x8] sm:$0xff]
        %v481 = vld [vmem:[#allocation2 + $0x10] sm:$0xff]
        %v482 = vld [vmem:[#allocation2 + $0x18] sm:$0xff]
        %v483 = vld [vmem:[#allocation2 + $0x20] sm:$0xff]
        %v484 = vld [vmem:[#allocation2 + $0x28] sm:$0xff]
        %v485 = vld [vmem:[#allocation2 + $0x30] sm:$0xff]
        %v486 = vld [vmem:[#allocation2 + $0x38] sm:$0xff]
        %v487 = vld [vmem:[#allocation2 + $0x40] sm:$0xff]
        %v488 = vld [vmem:[#allocation2 + $0x48] sm:$0xff]
        %v489 = vld [vmem:[#allocation2 + $0x50] sm:$0xff]
        %v490 = vld [vmem:[#allocation2 + $0x58] sm:$0xff]
        %v491 = vld [vmem:[#allocation2 + $0x60] sm:$0xff]
        %v492 = vld [vmem:[#allocation2 + $0x68] sm:$0xff]
        %v493 = vld [vmem:[#allocation2 + $0x70] sm:$0xff]
        %v494 = vld [vmem:[#allocation2 + $0x78] sm:$0xff]
        %v495 = vld [vmem:[%s2] sm:$0xff]
        %v496 = vld [vmem:[%s2 + $0x8] sm:$0xff]
        %498 = vset.pattern.permute.xlu0 0
        %499 = vperm.xlu0 %498, %v495
        %v500 = vpop.permute.xlu0 %499
        %503 = vset.pattern.permute.xlu0 0
        %504 = vperm.xlu0 %503, %v496
        %v505 = vpop.permute.xlu0 %504
        %v509 = vunpack.c.l.b16 %v477
        %v510 = vunpack.c.l.b16 %v478
        %v511 = vpack.c.b16 %v510, %v509
        %513 = vmatprep.subr.bf16.mxu0 %v480
        %514 = vmatpush1.bf16.msra.mxu0 %v479
        %515 = vmatprep.subr.bf16.mxu0 %v482
        %516 = vmatpush1.bf16.msra.mxu0 %v481
        %517 = vmatprep.subr.bf16.mxu0 %v484
        %518 = vmatpush1.bf16.msra.mxu0 %v483
        %519 = vmatprep.subr.bf16.mxu0 %v486
        %520 = vmatpush1.bf16.msra.mxu0 %v485
        %521 = vmatprep.subr.bf16.mxu0 %v488
        %522 = vmatpush1.bf16.msra.mxu0 %v487
        %523 = vmatprep.subr.bf16.mxu0 %v490
        %524 = vmatpush1.bf16.msra.mxu0 %v489
        %525 = vmatprep.subr.bf16.mxu0 %v492
        %526 = vmatpush1.bf16.msra.mxu0 %v491
        %527 = vmatprep.subr.bf16.mxu0 %v494
        %528 = vmatpush1.bf16.msra.mxu0 %v493
        %529 = vmatprep.subr.bf16.mxu0 0
        %530 = vmatpush1.bf16.msra.mxu0 0
        %531 = vmatprep.subr.bf16.mxu0 0
        %532 = vmatpush1.bf16.msra.mxu0 0
        %533 = vmatprep.subr.bf16.mxu0 0
        %534 = vmatpush1.bf16.msra.mxu0 0
        %535 = vmatprep.subr.bf16.mxu0 0
        %536 = vmatpush1.bf16.msra.mxu0 0
        %537 = vmatprep.subr.bf16.mxu0 0
        %538 = vmatpush1.bf16.msra.mxu0 0
        %539 = vmatprep.subr.bf16.mxu0 0
        %540 = vmatpush1.bf16.msra.mxu0 0
        %541 = vmatprep.subr.bf16.mxu0 0
        %542 = vmatpush1.bf16.msra.mxu0 0
        %543 = vmatprep.subr.bf16.mxu0 0
        %544 = vmatpush1.bf16.msra.mxu0 0
        %545 = vmatprep.mubr.bf16.mxu0 0
        %546 = vmatmul.mubr.bf16.gmra.mrb[0].mxu0 %v511
        %v547 = vpop.f32.mrb[0].mxu0
        %v548 = vadd.f32 %v500, %v547
        %v549 = vpop.f32.mrb[0].mxu0
        %v550 = vadd.f32 %v500, %v549
        %v551 = vpop.f32.mrb[0].mxu0
        %v552 = vadd.f32 %v505, %v551
        %v553 = vpop.f32.mrb[0].mxu0
        %v554 = vadd.f32 %v505, %v553
        %555 = vdwg.mxu0
        %v556 = vadd.f32 %v548, 3.0
        %v557 = vadd.f32 %v550, 3.0
        %v558 = vadd.f32 %v552, 3.0
        %v559 = vadd.f32 %v554, 3.0
        %v560 = vmax.f32 %v556, 0.0
        %v561 = vmax.f32 %v557, 0.0
        %v562 = vmax.f32 %v558, 0.0
        %v563 = vmax.f32 %v559, 0.0
        %v564 = vmin.f32 %v560, 6.0
        %v565 = vmin.f32 %v561, 6.0
        %v566 = vmin.f32 %v562, 6.0
        %v567 = vmin.f32 %v563, 6.0
        %v568 = vmul.f32 %v548, %v564
        %v569 = vmul.f32 %v550, %v565
        %v570 = vmul.f32 %v552, %v566
        %v571 = vmul.f32 %v554, %v567
        %v572 = vmul.f32 %v568, 0.16666667
        %v573 = vmul.f32 %v569, 0.16666667
        %v574 = vmul.f32 %v570, 0.16666667
        %v575 = vmul.f32 %v571, 0.16666667
        %576 = vst [vmem:[%s228] sm:$0xff] %v572
        %577 = vst [vmem:[%s228 + $0x8] sm:$0xff] %v573
        %578 = vst [vmem:[%s228 + $0x10] sm:$0xff] %v574
        %579 = vst [vmem:[%s228 + $0x18] sm:$0xff] %v575
        %s580 = sand.u32 %s119, 1
        %s581 = scalar_lea.sflag [#allocation5], %s580
        %s582 = sand.u32 %s119, 1
        %s583 = smul.addr %s582, 32
        %s584 = scalar_lea.vmem [#allocation8], %s583
        // Predicated region
        $region45: #{tpu_custom_call.1} parent=35 // pred_check
          %p585 = pneg %p129
        $region46: #{tpu_custom_call.1} parent=35 // pred_check_branch
          %587 = sbr.rel (%p585) target = $region48
        $region47: #{tpu_custom_call.1} parent=35 // pred_region
          %s589 = ssub.s32 512, 512
          %590 = vsyncadd %s581, %s589
          %s591 = smul.addr %s22, 4
          %s592 = smul.addr %s591, 128
          %s593 = scalar_lea.hbm %s4, %s592
          %s594 = sshll.u32 %s584, 4
          %s595 = int_to_ptr.vmem [resolvable:$true] %s594
          %600 = dma.vmem_to_hbm [thread:$0]  %s595, 512, %s593, %s581, 256, 256, 16
        $region48: #{tpu_custom_call.1} parent=35 // pred_fallthru
          _
      $region36: #{tpu_custom_call.1} parent=5 // pred_fallthru
        _
      %p601 = scmp.le.s32.totalorder 2, %s17
      // Predicated region
      $region49: #{tpu_custom_call.1} parent=5 // pred_check
        %p602 = pneg %p601
      $region50: #{tpu_custom_call.1} parent=5 // pred_check_branch
        %604 = sbr.rel (%p602) target = $region52
      $region51: #{tpu_custom_call.1} parent=5 // pred_region
        %s605 = ssub.s32 %s17, 2
        // Predicated region
        $region53: #{tpu_custom_call.1} parent=51 // pred_check
          %p606 = pneg %p135
        $region54: #{tpu_custom_call.1} parent=51 // pred_check_branch
          %608 = sbr.rel (%p606) target = $region56
        $region55: #{tpu_custom_call.1} parent=51 // pred_region
          %s609 = sand.u32 %s120, 1
          %s610 = scalar_lea.sflag [#allocation5], %s609
          %s611 = sand.u32 %s120, 1
          %s612 = smul.addr %s611, 32
          %s613 = scalar_lea.vmem [#allocation8], %s612
          %614 = dma.done %s610, 512
        $region56: #{tpu_custom_call.1} parent=51 // pred_fallthru
          _
      $region52: #{tpu_custom_call.1} parent=5 // pred_fallthru
        _
    $region6: #{tpu_custom_call.1} parent=1 // loop_footer
      %s21 = sadd.s32 1, %s17
    $region7: #{tpu_custom_call.1} parent=1 // loop_footer_branch
      %16 = sbr.rel target = $region3
    $region8: #{tpu_custom_call.1} parent=1 // loop_exit
      _
    %615 = vsyncpa [#allocation4], 1
    %s616 = scalar_lea.sflag [#allocation4], 1
    %617 = vsyncpa %s616, 1
    %618 = vsyncpa [#allocation7], 1
    %619 = vsyncpa [#allocation5], 1
    %s620 = scalar_lea.sflag [#allocation5], 1
    %621 = vsyncpa %s620, 1

</llo_original>
